<compile_context>
chip_gen: v7x
topology: tpu7x:2x2x1
jax: 0.10.0
libtpu: 0.0.40
codegen_flags: <defaults>
</compile_context>

<pallas_src>
import functools

import jax
import jax.numpy as jnp
from jax.experimental import pallas as pl
from jax.experimental.pallas import tpu as pltpu


def _round_up(n: int, m: int) -> int:
    return ((n + m - 1) // m) * m


def bpn_kernel(x_ref, w1_ref, b1_ref, w2_ref, b2_ref, o_ref):
    # Hidden pre-activation: (bb, d_i_p) @ (d_i_p, d_h_p) + (1, d_h_p)
    a = jnp.dot(x_ref[...], w1_ref[...], preferred_element_type=jnp.float32)
    a = a + b1_ref[...]
    # Sigmoid on the EUP (transcendental slot, co-issues with MXU/VPU work).
    h = jax.nn.sigmoid(a)
    # Output: (bb, d_h_p) @ (d_h_p, d_o_p) + (1, d_o_p)
    o = jnp.dot(h, w2_ref[...], preferred_element_type=jnp.float32)
    o_ref[...] = (o + b2_ref[...]).astype(o_ref.dtype)


@functools.partial(jax.jit, static_argnames=("block_b",))
def bpn_forward(x, w1, b1, w2, b2, *, block_b=256):
    """x: (B, d_i); w1: (d_i, d_h); b1: (d_h,); w2: (d_h, d_o); b2: (d_o,)."""
    B, d_i = x.shape
    d_h = w1.shape[1]
    d_o = w2.shape[1]

    # Lane-dense feature dims (multiples of 128), sublane-aligned batch tile.
    d_i_p = _round_up(d_i, 128)
    d_h_p = _round_up(d_h, 128)
    d_o_p = _round_up(d_o, 128)
    bb = min(block_b, _round_up(B, 8))      # batch tile (multiple of 8)
    B_p = _round_up(B, bb)
    n_tiles = B_p // bb

    # Zero-pad. Padded hidden units produce sigmoid(0)=0.5 but meet zero rows
    # of w2_p, so they contribute nothing to the real outputs.
    x_p = jnp.zeros((B_p, d_i_p), x.dtype).at[:B, :d_i].set(x)
    w1_p = jnp.zeros((d_i_p, d_h_p), w1.dtype).at[:d_i, :d_h].set(w1)
    b1_p = jnp.zeros((1, d_h_p), b1.dtype).at[0, :d_h].set(b1)
    w2_p = jnp.zeros((d_h_p, d_o_p), w2.dtype).at[:d_h, :d_o].set(w2)
    b2_p = jnp.zeros((1, d_o_p), b2.dtype).at[0, :d_o].set(b2)

    out_p = pl.pallas_call(
        bpn_kernel,
        out_shape=jax.ShapeDtypeStruct((B_p, d_o_p), x.dtype),
        grid=(n_tiles,),
        in_specs=[
            pl.BlockSpec((bb, d_i_p), lambda i: (i, 0)),     # x: batch-tiled
            pl.BlockSpec((d_i_p, d_h_p), lambda i: (0, 0)),  # w1: VMEM-resident
            pl.BlockSpec((1, d_h_p), lambda i: (0, 0)),      # b1: VMEM-resident
            pl.BlockSpec((d_h_p, d_o_p), lambda i: (0, 0)),  # w2: VMEM-resident
            pl.BlockSpec((1, d_o_p), lambda i: (0, 0)),      # b2: VMEM-resident
        ],
        out_specs=pl.BlockSpec((bb, d_o_p), lambda i: (i, 0)),
        compiler_params=pltpu.CompilerParams(
            dimension_semantics=("parallel",)),
    )(x_p, w1_p, b1_p, w2_p, b2_p)

    return out_p[:B, :d_o]


def reference_forward(x, w1, b1, w2, b2):
    a = x @ w1 + b1
    h = 1.0 / (1.0 + jnp.exp(-a))
    return h @ w2 + b2


if __name__ == "__main__":
    # Small shapes consistent with the module: d_i=32, d_h=64, d_o=16, batch=8.
    B, d_i, d_h, d_o = 8, 32, 64, 16

    key = jax.random.PRNGKey(0)
    kx, kw1, kw2 = jax.random.split(key, 3)

    x = jax.random.normal(kx, (B, d_i), dtype=jnp.float32)

    # PyTorch init: weight ~ N(0, 0.1), bias = 0.
    # PyTorch Linear weight is (out, in); we store the transpose (in, out).
    w1 = 0.1 * jax.random.normal(kw1, (d_i, d_h), dtype=jnp.float32)
    b1 = jnp.zeros((d_h,), dtype=jnp.float32)
    w2 = 0.1 * jax.random.normal(kw2, (d_h, d_o), dtype=jnp.float32)
    b2 = jnp.zeros((d_o,), dtype=jnp.float32)

    out = bpn_forward(x, w1, b1, w2, b2)
    out = jax.block_until_ready(out)

    ref = reference_forward(x, w1, b1, w2, b2)
    assert out.shape == (B, d_o)
    assert jnp.allclose(out, ref, atol=1e-5, rtol=1e-5)

    print("KERNEL_OK")
</pallas_src>

<mosaic_0001>
module attributes {stable_mosaic.version = 11 : i64} {
  func.func @bpn_kernel(%arg0: i32, %arg1: memref<8x128xf32, #tpu.memory_space<vmem>>, %arg2: memref<128x128xf32, #tpu.memory_space<vmem>>, %arg3: memref<1x128xf32, #tpu.memory_space<vmem>>, %arg4: memref<128x128xf32, #tpu.memory_space<vmem>>, %arg5: memref<1x128xf32, #tpu.memory_space<vmem>>, %arg6: memref<8x128xf32, #tpu.memory_space<vmem>>) attributes {dimension_semantics = [#tpu.dimension_semantics<parallel>], iteration_bounds = array<i64: 1>, scalar_prefetch = 0 : i64, scratch_operands = 0 : i64, tpu.core_type = #tpu.core_type<tc>, window_params = [{transform_indices = @transform_0, window_bounds = array<i64: 8, 128>}, {pipeline_mode = #tpu.pipeline_mode<synchronous>, transform_indices = @transform_1, window_bounds = array<i64: 128, 128>}, {pipeline_mode = #tpu.pipeline_mode<synchronous>, transform_indices = @transform_2, window_bounds = array<i64: 1, 128>}, {pipeline_mode = #tpu.pipeline_mode<synchronous>, transform_indices = @transform_3, window_bounds = array<i64: 128, 128>}, {pipeline_mode = #tpu.pipeline_mode<synchronous>, transform_indices = @transform_4, window_bounds = array<i64: 1, 128>}, {transform_indices = @transform_5, window_bounds = array<i64: 8, 128>}]} {
    %c0 = arith.constant 0 : index
    %c0_0 = arith.constant 0 : index
    %0 = vector.load %arg1[%c0, %c0_0] : memref<8x128xf32, #tpu.memory_space<vmem>>, vector<8x128xf32>
    %c0_1 = arith.constant 0 : index
    %c0_2 = arith.constant 0 : index
    %1 = vector.load %arg2[%c0_1, %c0_2] : memref<128x128xf32, #tpu.memory_space<vmem>>, vector<128x128xf32>
    %cst = arith.constant dense<0.000000e+00> : vector<8x128xf32>
    %2 = tpu.matmul %0, %1, %cst {dimension_numbers = #tpu.dot_dimension_numbers<[1], [0], [0], [1], [0, 0, 1, 1], [], []>} : vector<8x128xf32>, vector<128x128xf32>, vector<8x128xf32> -> vector<8x128xf32>
    %c0_3 = arith.constant 0 : index
    %c0_4 = arith.constant 0 : index
    %3 = vector.load %arg3[%c0_3, %c0_4] : memref<1x128xf32, #tpu.memory_space<vmem>>, vector<1x128xf32>
    %4 = vector.broadcast %3 : vector<1x128xf32> to vector<8x128xf32>
    %5 = arith.addf %2, %4 : vector<8x128xf32>
    %6 = arith.negf %5 : vector<8x128xf32>
    %7 = math.exp %6 : vector<8x128xf32>
    %cst_5 = arith.constant 1.000000e+00 : f32
    %8 = vector.broadcast %cst_5 : f32 to vector<8x128xf32>
    %9 = arith.addf %8, %7 : vector<8x128xf32>
    %10 = arith.divf %8, %9 : vector<8x128xf32>
    %c0_6 = arith.constant 0 : index
    %c0_7 = arith.constant 0 : index
    %11 = vector.load %arg4[%c0_6, %c0_7] : memref<128x128xf32, #tpu.memory_space<vmem>>, vector<128x128xf32>
    %cst_8 = arith.constant dense<0.000000e+00> : vector<8x128xf32>
    %12 = tpu.matmul %10, %11, %cst_8 {dimension_numbers = #tpu.dot_dimension_numbers<[1], [0], [0], [1], [0, 0, 1, 1], [], []>} : vector<8x128xf32>, vector<128x128xf32>, vector<8x128xf32> -> vector<8x128xf32>
    %c0_9 = arith.constant 0 : index
    %c0_10 = arith.constant 0 : index
    %13 = vector.load %arg5[%c0_9, %c0_10] : memref<1x128xf32, #tpu.memory_space<vmem>>, vector<1x128xf32>
    %14 = vector.broadcast %13 : vector<1x128xf32> to vector<8x128xf32>
    %15 = arith.addf %12, %14 : vector<8x128xf32>
    %c0_11 = arith.constant 0 : index
    %c0_12 = arith.constant 0 : index
    %16 = vector.load %arg6[%c0_11, %c0_12] : memref<8x128xf32, #tpu.memory_space<vmem>>, vector<8x128xf32>
    tpu.vector_store %arg6[%c0_11, %c0_12], %15 {strides = array<i32>} : memref<8x128xf32, #tpu.memory_space<vmem>>, vector<8x128xf32>,
    return
  }
  func.func @transform_0(%arg0: i32) -> (i32, i32) {
    %c0_i32 = arith.constant 0 : i32
    %c0_i32_0 = arith.constant 0 : i32
    return %arg0, %c0_i32 : i32, i32
  }
  func.func @transform_1(%arg0: i32) -> (i32, i32) {
    %c0_i32 = arith.constant 0 : i32
    %c0_i32_0 = arith.constant 0 : i32
    %c0_i32_1 = arith.constant 0 : i32
    return %c0_i32, %c0_i32_0 : i32, i32
  }
  func.func @transform_2(%arg0: i32) -> (i32, i32) {
    %c0_i32 = arith.constant 0 : i32
    %c0_i32_0 = arith.constant 0 : i32
    %c0_i32_1 = arith.constant 0 : i32
    return %c0_i32, %c0_i32_0 : i32, i32
  }
  func.func @transform_3(%arg0: i32) -> (i32, i32) {
    %c0_i32 = arith.constant 0 : i32
    %c0_i32_0 = arith.constant 0 : i32
    %c0_i32_1 = arith.constant 0 : i32
    return %c0_i32, %c0_i32_0 : i32, i32
  }
  func.func @transform_4(%arg0: i32) -> (i32, i32) {
    %c0_i32 = arith.constant 0 : i32
    %c0_i32_0 = arith.constant 0 : i32
    %c0_i32_1 = arith.constant 0 : i32
    return %c0_i32, %c0_i32_0 : i32, i32
  }
  func.func @transform_5(%arg0: i32) -> (i32, i32) {
    %c0_i32 = arith.constant 0 : i32
    %c0_i32_0 = arith.constant 0 : i32
    return %arg0, %c0_i32 : i32, i32
  }
}

</mosaic_0001>

<llo_original>
// kernel: bpn_forward.1
$region0: #{bpn_forward.1}
  #allocation0 [shape = 'u32[]', space=smem, size = 0x4, offset = 0x4, fixed_abs, tag = 'smem constant byte address 0x4 - core index']
  #allocation1 [shape = 'u32[144,128]{1,0:T(1,128)}', space=vmem, size = 0x12000, scoped, tag = 'internal scratch']
  %s0 = inlined_call_operand.vmem [shape: f32[8,128], index: 0, kind: input, shape index: {}]
  %s1 = inlined_call_operand.vmem [shape: f32[128,128], index: 1, kind: input, shape index: {}]
  %s2 = inlined_call_operand.vmem [shape: f32[1,128], index: 2, kind: input, shape index: {}]
  %s3 = inlined_call_operand.vmem [shape: f32[128,128], index: 3, kind: input, shape index: {}]
  %s4 = inlined_call_operand.vmem [shape: f32[1,128], index: 4, kind: input, shape index: {}]
  %s5 = inlined_call_operand.hbm [shape: f32[8,128], index: 5, kind: output, shape index: {}]
  %s6 = sld [smem:[#allocation0]]
  $region30: #{bpn_forward.1} parent=0
    _
  %s8 = ssub.s32 1, %s6
  %s9 = scalar_select 0, %s8, %s6
  $region1: #{bpn_forward.1} parent=0
    #allocation2 [shape = 'u8[4096]{0}', space=vmem, size = 0x1000, scoped, tag = 'output window, operand 0, single buffered']
    #allocation3 [shape = 's32[1]{0}', space=sflag, size = 0x4, scoped, tag = 'scoped memory for bpn_forward.1']
    %10 = vsyncpa [#allocation3], 0
    // Predicated region
    $region2: #{bpn_forward.1} parent=1 // pred_check
      _
    $region3: #{bpn_forward.1} parent=1 // pred_check_branch
      %12 = sbr.rel (0) target = $region5
    $region4: #{bpn_forward.1} parent=1 // pred_region
      _
    $region5: #{bpn_forward.1} parent=1 // pred_fallthru
      _
    // Predicated region
    $region6: #{bpn_forward.1} parent=1 // pred_check
      _
    $region7: #{bpn_forward.1} parent=1 // pred_check_branch
      %14 = sbr.rel (0) target = $region9
    $region8: #{bpn_forward.1} parent=1 // pred_region
      _
    $region9: #{bpn_forward.1} parent=1 // pred_fallthru
      _
    // Predicated region
    $region10: #{bpn_forward.1} parent=1 // pred_check
      _
    $region11: #{bpn_forward.1} parent=1 // pred_check_branch
      %16 = sbr.rel (0) target = $region13
    $region12: #{bpn_forward.1} parent=1 // pred_region
      _
    $region13: #{bpn_forward.1} parent=1 // pred_fallthru
      _
    // Predicated region
    $region14: #{bpn_forward.1} parent=1 // pred_check
      _
    $region15: #{bpn_forward.1} parent=1 // pred_check_branch
      %18 = sbr.rel (0) target = $region17
    $region16: #{bpn_forward.1} parent=1 // pred_region
      _
    $region17: #{bpn_forward.1} parent=1 // pred_fallthru
      _
    // Predicated region
    $region18: #{bpn_forward.1} parent=1 // pred_check
      _
    $region19: #{bpn_forward.1} parent=1 // pred_check_branch
      %20 = sbr.rel (0) target = $region21
    $region20: #{bpn_forward.1} parent=1 // pred_region
      _
    $region21: #{bpn_forward.1} parent=1 // pred_fallthru
      _
    %v21 = vld [vmem:[%s0] sm:$0xff]
    %v22 = vld [vmem:[%s1] sm:$0xff]
    %v23 = vld [vmem:[%s1 + $0x8] sm:$0xff]
    %v24 = vld [vmem:[%s1 + $0x10] sm:$0xff]
    %v25 = vld [vmem:[%s1 + $0x18] sm:$0xff]
    %v26 = vld [vmem:[%s1 + $0x20] sm:$0xff]
    %v27 = vld [vmem:[%s1 + $0x28] sm:$0xff]
    %v28 = vld [vmem:[%s1 + $0x30] sm:$0xff]
    %v29 = vld [vmem:[%s1 + $0x38] sm:$0xff]
    %v30 = vld [vmem:[%s1 + $0x40] sm:$0xff]
    %v31 = vld [vmem:[%s1 + $0x48] sm:$0xff]
    %v32 = vld [vmem:[%s1 + $0x50] sm:$0xff]
    %v33 = vld [vmem:[%s1 + $0x58] sm:$0xff]
    %v34 = vld [vmem:[%s1 + $0x60] sm:$0xff]
    %v35 = vld [vmem:[%s1 + $0x68] sm:$0xff]
    %v36 = vld [vmem:[%s1 + $0x70] sm:$0xff]
    %v37 = vld [vmem:[%s1 + $0x78] sm:$0xff]
    %v38 = vld [vmem:[%s2] sm:$0x1]
    %v40 = vlaneseq
    %v41 = vshrl.u32 %v40, 7
    %v42 = vsub.s32 0, %v41
    %v43 = vrot.slane %v38, %v42
    %45 = vmatprep.subr.mxu0 0.0
    %46 = vmatpush1.msra.mxu0 %v22
    %47 = vmatprep.subr.mxu0 0.0
    %48 = vmatpush1.msra.mxu0 %v23
    %49 = vmatprep.subr.mxu0 0.0
    %50 = vmatpush1.msra.mxu0 %v24
    %51 = vmatprep.subr.mxu0 0.0
    %52 = vmatpush1.msra.mxu0 %v25
    %53 = vmatprep.subr.mxu0 0.0
    %54 = vmatpush1.msra.mxu0 %v26
    %55 = vmatprep.subr.mxu0 0.0
    %56 = vmatpush1.msra.mxu0 %v27
    %57 = vmatprep.subr.mxu0 0.0
    %58 = vmatpush1.msra.mxu0 %v28
    %59 = vmatprep.subr.mxu0 0.0
    %60 = vmatpush1.msra.mxu0 %v29
    %61 = vmatprep.subr.mxu0 0.0
    %62 = vmatpush1.msra.mxu0 %v30
    %63 = vmatprep.subr.mxu0 0.0
    %64 = vmatpush1.msra.mxu0 %v31
    %65 = vmatprep.subr.mxu0 0.0
    %66 = vmatpush1.msra.mxu0 %v32
    %67 = vmatprep.subr.mxu0 0.0
    %68 = vmatpush1.msra.mxu0 %v33
    %69 = vmatprep.subr.mxu0 0.0
    %70 = vmatpush1.msra.mxu0 %v34
    %71 = vmatprep.subr.mxu0 0.0
    %72 = vmatpush1.msra.mxu0 %v35
    %73 = vmatprep.subr.mxu0 0.0
    %74 = vmatpush1.msra.mxu0 %v36
    %75 = vmatprep.subr.mxu0 0.0
    %76 = vmatpush1.msra.mxu0 %v37
    %77 = vmatprep.subr.mxu0 0.0
    %78 = vmatpush1.msra.mxu0 0.0
    %79 = vmatprep.subr.mxu0 0.0
    %80 = vmatpush1.msra.mxu0 0.0
    %81 = vmatprep.subr.mxu0 0.0
    %82 = vmatpush1.msra.mxu0 0.0
    %83 = vmatprep.subr.mxu0 0.0
    %84 = vmatpush1.msra.mxu0 0.0
    %85 = vmatprep.subr.mxu0 0.0
    %86 = vmatpush1.msra.mxu0 0.0
    %87 = vmatprep.subr.mxu0 0.0
    %88 = vmatpush1.msra.mxu0 0.0
    %89 = vmatprep.subr.mxu0 0.0
    %90 = vmatpush1.msra.mxu0 0.0
    %91 = vmatprep.subr.mxu0 0.0
    %92 = vmatpush1.msra.mxu0 0.0
    %93 = vmatprep.subr.mxu0 0.0
    %94 = vmatpush1.msra.mxu0 0.0
    %95 = vmatprep.subr.mxu0 0.0
    %96 = vmatpush1.msra.mxu0 0.0
    %97 = vmatprep.subr.mxu0 0.0
    %98 = vmatpush1.msra.mxu0 0.0
    %99 = vmatprep.subr.mxu0 0.0
    %100 = vmatpush1.msra.mxu0 0.0
    %101 = vmatprep.subr.mxu0 0.0
    %102 = vmatpush1.msra.mxu0 0.0
    %103 = vmatprep.subr.mxu0 0.0
    %104 = vmatpush1.msra.mxu0 0.0
    %105 = vmatprep.subr.mxu0 0.0
    %106 = vmatpush1.msra.mxu0 0.0
    %107 = vmatprep.subr.mxu0 0.0
    %108 = vmatpush1.msra.mxu0 0.0
    %109 = vmatprep.mubr.f32.mxu0 0.0
    %110 = vmatmul.mubr.f32.gmra.mrb[0].mxu0 %v21
    %v111 = vpop.f32.mrb[0].mxu0
    %v112 = vadd.f32 %v43, %v111
    %v113 = vpop.f32.mrb[0].mxu0
    %114 = vdwg.mxu0
    %v115 = vxor.u32 %v112, 2147483648
    %v116 = vmul.f32 %v115, 1.442695
    %v117 = vpow.pop %v116
    %v118 = vadd.f32 %v117, 1.0
    %v119 = vrcp.pop %v118
    %v120 = vmul.f32 1.0, %v119
    %v121 = vld [vmem:[%s3] sm:$0xff]
    %v122 = vld [vmem:[%s3 + $0x8] sm:$0xff]
    %v123 = vld [vmem:[%s3 + $0x10] sm:$0xff]
    %v124 = vld [vmem:[%s3 + $0x18] sm:$0xff]
    %v125 = vld [vmem:[%s3 + $0x20] sm:$0xff]
    %v126 = vld [vmem:[%s3 + $0x28] sm:$0xff]
    %v127 = vld [vmem:[%s3 + $0x30] sm:$0xff]
    %v128 = vld [vmem:[%s3 + $0x38] sm:$0xff]
    %v129 = vld [vmem:[%s3 + $0x40] sm:$0xff]
    %v130 = vld [vmem:[%s3 + $0x48] sm:$0xff]
    %v131 = vld [vmem:[%s3 + $0x50] sm:$0xff]
    %v132 = vld [vmem:[%s3 + $0x58] sm:$0xff]
    %v133 = vld [vmem:[%s3 + $0x60] sm:$0xff]
    %v134 = vld [vmem:[%s3 + $0x68] sm:$0xff]
    %v135 = vld [vmem:[%s3 + $0x70] sm:$0xff]
    %v136 = vld [vmem:[%s3 + $0x78] sm:$0xff]
    %v137 = vld [vmem:[%s4] sm:$0x1]
    %v139 = vlaneseq
    %v140 = vshrl.u32 %v139, 7
    %v141 = vsub.s32 0, %v140
    %v142 = vrot.slane %v137, %v141
    %144 = vmatprep.subr.mxu0 0.0
    %145 = vmatpush1.msra.mxu0 %v121
    %146 = vmatprep.subr.mxu0 0.0
    %147 = vmatpush1.msra.mxu0 %v122
    %148 = vmatprep.subr.mxu0 0.0
    %149 = vmatpush1.msra.mxu0 %v123
    %150 = vmatprep.subr.mxu0 0.0
    %151 = vmatpush1.msra.mxu0 %v124
    %152 = vmatprep.subr.mxu0 0.0
    %153 = vmatpush1.msra.mxu0 %v125
    %154 = vmatprep.subr.mxu0 0.0
    %155 = vmatpush1.msra.mxu0 %v126
    %156 = vmatprep.subr.mxu0 0.0
    %157 = vmatpush1.msra.mxu0 %v127
    %158 = vmatprep.subr.mxu0 0.0
    %159 = vmatpush1.msra.mxu0 %v128
    %160 = vmatprep.subr.mxu0 0.0
    %161 = vmatpush1.msra.mxu0 %v129
    %162 = vmatprep.subr.mxu0 0.0
    %163 = vmatpush1.msra.mxu0 %v130
    %164 = vmatprep.subr.mxu0 0.0
    %165 = vmatpush1.msra.mxu0 %v131
    %166 = vmatprep.subr.mxu0 0.0
    %167 = vmatpush1.msra.mxu0 %v132
    %168 = vmatprep.subr.mxu0 0.0
    %169 = vmatpush1.msra.mxu0 %v133
    %170 = vmatprep.subr.mxu0 0.0
    %171 = vmatpush1.msra.mxu0 %v134
    %172 = vmatprep.subr.mxu0 0.0
    %173 = vmatpush1.msra.mxu0 %v135
    %174 = vmatprep.subr.mxu0 0.0
    %175 = vmatpush1.msra.mxu0 %v136
    %176 = vmatprep.subr.mxu0 0.0
    %177 = vmatpush1.msra.mxu0 0.0
    %178 = vmatprep.subr.mxu0 0.0
    %179 = vmatpush1.msra.mxu0 0.0
    %180 = vmatprep.subr.mxu0 0.0
    %181 = vmatpush1.msra.mxu0 0.0
    %182 = vmatprep.subr.mxu0 0.0
    %183 = vmatpush1.msra.mxu0 0.0
    %184 = vmatprep.subr.mxu0 0.0
    %185 = vmatpush1.msra.mxu0 0.0
    %186 = vmatprep.subr.mxu0 0.0
    %187 = vmatpush1.msra.mxu0 0.0
    %188 = vmatprep.subr.mxu0 0.0
    %189 = vmatpush1.msra.mxu0 0.0
    %190 = vmatprep.subr.mxu0 0.0
    %191 = vmatpush1.msra.mxu0 0.0
    %192 = vmatprep.subr.mxu0 0.0
    %193 = vmatpush1.msra.mxu0 0.0
    %194 = vmatprep.subr.mxu0 0.0
    %195 = vmatpush1.msra.mxu0 0.0
    %196 = vmatprep.subr.mxu0 0.0
    %197 = vmatpush1.msra.mxu0 0.0
    %198 = vmatprep.subr.mxu0 0.0
    %199 = vmatpush1.msra.mxu0 0.0
    %200 = vmatprep.subr.mxu0 0.0
    %201 = vmatpush1.msra.mxu0 0.0
    %202 = vmatprep.subr.mxu0 0.0
    %203 = vmatpush1.msra.mxu0 0.0
    %204 = vmatprep.subr.mxu0 0.0
    %205 = vmatpush1.msra.mxu0 0.0
    %206 = vmatprep.subr.mxu0 0.0
    %207 = vmatpush1.msra.mxu0 0.0
    %208 = vmatprep.mubr.f32.mxu0 0.0
    %209 = vmatmul.mubr.f32.gmra.mrb[0].mxu0 %v120
    %v210 = vpop.f32.mrb[0].mxu0
    %v211 = vadd.f32 %v142, %v210
    %v212 = vpop.f32.mrb[0].mxu0
    %213 = vdwg.mxu0
    %214 = vst [vmem:[#allocation2] sm:$0xff] %v211
    // Predicated region
    $region22: #{bpn_forward.1} parent=1 // pred_check
      _
    $region23: #{bpn_forward.1} parent=1 // pred_check_branch
      %216 = sbr.rel (0) target = $region25
    $region24: #{bpn_forward.1} parent=1 // pred_region
      %s218 = ssub.s32 128, 128
      %219 = vsyncadd [#allocation3], %s218
      %s221 = sshll.u32 [#allocation2], 4
      %s222 = int_to_ptr.vmem [resolvable:$true] %s221
      %224 = dma.vmem_to_hbm [thread:$0]  %s222, 128, %s5, [#allocation3]
    $region25: #{bpn_forward.1} parent=1 // pred_fallthru
      _
    // Predicated region
    $region26: #{bpn_forward.1} parent=1 // pred_check
      _
    $region27: #{bpn_forward.1} parent=1 // pred_check_branch
      %226 = sbr.rel (0) target = $region29
    $region28: #{bpn_forward.1} parent=1 // pred_region
      %227 = dma.done [#allocation3], 128
    $region29: #{bpn_forward.1} parent=1 // pred_fallthru
      _
    %228 = vsyncpa [#allocation3], 1

</llo_original>
